<compile_context>
chip_gen: v7x
topology: tpu7x:2x2x1
jax: 0.10.0
libtpu: 0.0.40
codegen_flags: <defaults>
</compile_context>

<pallas_src>
import functools

import jax
import jax.numpy as jnp
from jax.experimental import pallas as pl
from jax.experimental.pallas import tpu as pltpu


def _round_up(x, m):
    return ((x + m - 1) // m) * m


def _supcon_kernel(q_ref, k_ref, qlab_ref, klab_ref, cnt_ref, out_ref,
                   m_ref, l_ref, ps_ref, *,
                   n_valid, n_cols_padded, inv_temp, loss_scale, tm, tn,
                   assume_normalized):
    # q_ref:    [TM, D]  anchor features, pre-scaled by 1/temperature (row tile i)
    # k_ref:    [TN, D]  contrast features (col tile j)
    # qlab_ref: [TM, 1]  canonical pseudo-labels of anchor rows (int32, pad = -1)
    # klab_ref: [1, TN]  canonical pseudo-labels of contrast cols (int32, pad = -1)
    # cnt_ref:  [TM, 1]  precomputed positives-per-anchor (== mask.sum(1))
    # out_ref:  [TM, 1]  per-anchor loss (written on the last column tile)
    # scratch:  m (running row max; unused when assume_normalized),
    #           l (running exp-sum), ps (running sum mask*logits) -- [TM,1] f32.
    i = pl.program_id(0)
    j = pl.program_id(1)

    @pl.when(j == 0)
    def _init():
        if not assume_normalized:
            m_ref[...] = jnp.full((tm, 1), -jnp.inf, dtype=jnp.float32)
        l_ref[...] = jnp.zeros((tm, 1), dtype=jnp.float32)
        ps_ref[...] = jnp.zeros((tm, 1), dtype=jnp.float32)

    # [TM, TN] scaled logits.  Anchors already carry 1/temperature, so this is a
    # native (bf16 x bf16 -> f32) MXU matmul with no per-element rescale and no
    # explicit transpose (contract dim 1 of both operands).
    s = jax.lax.dot_general(q_ref[...], k_ref[...], (((1,), (1,)), ((), ())),
                            preferred_element_type=jnp.float32)

    # Positive-pair mask rebuilt from labels (no NxN HBM input).  Padded columns
    # carry label -1 and real labels are remapped to >= 0, so they never match.
    pos = qlab_ref[...] == klab_ref[...]                               # [TM, TN]

    has_pad = n_valid != n_cols_padded                                  # static
    hits_diag = jnp.logical_and(j * tn < (i + 1) * tm, i * tm < (j + 1) * tn)
    if has_pad:
        needs_mask = jnp.logical_or(hits_diag, (j + 1) * tn > n_valid)
    else:
        needs_mask = hits_diag

    def _update(masked):
        if masked:
            row_g = i * tm + jax.lax.broadcasted_iota(jnp.int32, (tm, tn), 0)
            col_g = j * tn + jax.lax.broadcasted_iota(jnp.int32, (tm, tn), 1)
            not_diag = row_g != col_g
            denom_ok = not_diag
            if has_pad:
                denom_ok = jnp.logical_and(denom_ok, klab_ref[...] >= 0)
            posf = jnp.logical_and(pos, not_diag).astype(jnp.float32)
        else:
            denom_ok = None
            posf = pos.astype(jnp.float32)

        if assume_normalized:
            # L2-normalized features: the diagonal (x.x)/T == 1/T is the row max;
            # the max cancels exactly in the final loss, so use it statically.
            p = jnp.exp(s - inv_temp)
            if denom_ok is not None:
                p = jnp.where(denom_ok, p, 0.0)
            l_ref[...] += jnp.sum(p, axis=1, keepdims=True)
        else:
            # Online softmax denominator.  The row max may include the diagonal
            # and padded columns (their s == 0): it only needs to upper-bound the
            # valid logits, and cancels exactly in the final loss.
            tile_max = jnp.max(s, axis=1, keepdims=True)
            m_prev = m_ref[...]
            m_new = jnp.maximum(m_prev, tile_max)
            if denom_ok is not None:
                p = jnp.exp(jnp.where(denom_ok, s, -jnp.inf) - m_new)
            else:
                p = jnp.exp(s - m_new)
            l_ref[...] = (jnp.exp(m_prev - m_new) * l_ref[...]
                          + jnp.sum(p, axis=1, keepdims=True))
            m_ref[...] = m_new

        # sum(mask * logits) is linear in the raw scaled logits -> no max shift.
        ps_ref[...] += jnp.sum(posf * s, axis=1, keepdims=True)

    @pl.when(needs_mask)
    def _slow():
        _update(masked=True)

    @pl.when(jnp.logical_not(needs_mask))
    def _fast():
        _update(masked=False)

    @pl.when(j == pl.num_programs(1) - 1)
    def _finalize():
        cnt = cnt_ref[...]
        if assume_normalized:
            log_denom = inv_temp + jnp.log(l_ref[...])
        else:
            log_denom = m_ref[...] + jnp.log(l_ref[...])
        mean_lp = (ps_ref[...] - cnt * log_denom) * pl.reciprocal(cnt + 1e-8,
                                                                  approx=False)
        # TODO(synk): a lane-dense (1, TM) output block would avoid the 1-lane
        # masked store, but this write happens only once per row tile.
        out_ref[...] = loss_scale * mean_lp


def supcon_loss(features, labels=None, mask=None, *, temperature=0.07,
                contrast_mode="all", base_temperature=0.07,
                compute_dtype=jnp.bfloat16, assume_normalized=False):
    """JAX/Pallas port of SupConLoss.forward (contrast_mode='all').

    compute_dtype: dtype the feature tiles are fed to the MXU in (default bf16
      with f32 accumulation).  Pass None to keep the input dtype bit-exact.
    assume_normalized: opt-in fast path, only valid when `features` are
      L2-normalized along the last dim (the SupCon convention).
    """
    if features.ndim < 3:
        raise ValueError("`features` needs to be [bsz, n_views, ...]")
    if features.ndim > 3:
        features = features.reshape(features.shape[0], features.shape[1], -1)
    if contrast_mode == "one":
        # TODO(synk): contrast_mode='one' (single anchor view) not implemented.
        raise NotImplementedError("contrast_mode='one' not implemented")
    if contrast_mode != "all":
        raise ValueError(f"Unknown mode: {contrast_mode}")

    bsz, n_views, dim = features.shape

    if labels is not None and mask is not None:
        raise ValueError("Cannot define both `labels` and `mask`")
    if mask is not None:
        # TODO(synk): arbitrary user-provided [bsz, bsz] masks are not expressible
        # as label equality; not implemented in the tiled kernel.
        raise NotImplementedError("explicit `mask` argument not implemented")
    if labels is None:
        codes = jnp.arange(bsz, dtype=jnp.int32)              # eye(bsz) positives
        per_sample = jnp.ones((bsz,), jnp.float32)
    else:
        labels = jnp.asarray(labels).reshape(-1)
        if labels.shape[0] != bsz:
            raise ValueError("Num of labels does not match num of features")
        eq = labels[:, None] == labels[None, :]
        # canonical non-negative codes (first-occurrence index) so the -1 padding
        # sentinel can never collide with a user label (e.g. a real label of -1).
        codes = jnp.argmax(eq, axis=1).astype(jnp.int32)
        per_sample = jnp.sum(eq, axis=1).astype(jnp.float32)

    n = n_views * bsz
    # contrast_feature = cat(unbind(features, dim=1), dim=0): row index = v*bsz + b
    contrast_feature = jnp.concatenate(
        [features[:, v, :] for v in range(n_views)], axis=0)
    pseudo_labels = jnp.tile(codes, (n_views,))                # [n]
    # positives per anchor = n_views * |class of anchor| - 1 (self excluded); this
    # equals mask.sum(1) of the torch code, precomputed so the kernel skips one
    # cross-lane (XLU) reduction per [TM,TN] tile.
    pos_count = jnp.tile(n_views * per_sample - 1.0, (n_views,))   # [n] f32

    inv_temp = float(1.0 / temperature)
    cdtype = features.dtype if compute_dtype is None else jnp.dtype(compute_dtype)
    itemsize = jnp.dtype(cdtype).itemsize

    # Fold 1/temperature into the *anchor* copy (in f32, then cast) so the kernel
    # dot stays a native low-precision matmul and needs no per-element rescale.
    anchor_feature = (contrast_feature.astype(jnp.float32) * inv_temp).astype(cdtype)
    contrast_cast = contrast_feature.astype(cdtype)

    # ---- tile sizes -----------------------------------------------------------
    # TM is the only knob that reduces the contrast re-read traffic (contrast is
    # re-read n_rows/TM times), so grow it first; TN only amortizes grid-step
    # overhead.  Shrink to a conservative ~20 MiB VMEM budget so the tiles fit
    # every generation's scoped VMEM (v7x: 64 MiB physical / 32 MiB default).
    n128 = _round_up(n, 128)
    if n128 <= 256:
        # Small N: one column tile; split rows in two so the "parallel" row axis
        # can be sharded across both v7x TensorCores.
        tn = n128
        tm = max(8, _round_up((n + 1) // 2, 8))
    else:
        tm = min(512, n128)
        tn = 256
        budget = 20 * 1024 * 1024

        def footprint(tm_, tn_):
            feat = 2 * (tm_ + tn_) * dim * itemsize      # double-buffered tiles
            tmp = 6 * tm_ * tn_ * 4                      # s/p/mask f32 temporaries
            return feat + tmp

        while tn > 128 and footprint(tm, tn) > budget:   # keep TM big: shrink TN
            tn //= 2
        while tm > 128 and footprint(tm, tn) > budget:
            tm //= 2

    # Anchor (rows) and contrast (cols) are separate arrays so they can be padded
    # to different multiples; only column padding affects the softmax denominator.
    n_rows_pad = _round_up(n, tm)
    n_cols_pad = _round_up(n, tn)

    q_arr = jnp.pad(anchor_feature, ((0, n_rows_pad - n), (0, 0)))
    k_arr = jnp.pad(contrast_cast, ((0, n_cols_pad - n), (0, 0)))
    row_lab = jnp.pad(pseudo_labels, (0, n_rows_pad - n),
                      constant_values=-1).reshape(n_rows_pad, 1)
    col_lab = jnp.pad(pseudo_labels, (0, n_cols_pad - n),
                      constant_values=-1).reshape(1, n_cols_pad)
    cnt_arr = jnp.pad(pos_count, (0, n_rows_pad - n)).reshape(n_rows_pad, 1)

    kernel = functools.partial(
        _supcon_kernel,
        n_valid=n,
        n_cols_padded=n_cols_pad,
        inv_temp=inv_temp,
        loss_scale=float(-(temperature / base_temperature)),
        tm=tm, tn=tn,
        assume_normalized=assume_normalized,
    )

    cost = pl.CostEstimate(
        flops=int(2 * n_rows_pad * n_cols_pad * dim + 10 * n_rows_pad * n_cols_pad),
        transcendentals=int(n_rows_pad * n_cols_pad),
        bytes_accessed=int(n_cols_pad * dim * itemsize * (n_rows_pad // tm)
                           + n_rows_pad * dim * itemsize
                           + 4 * (3 * n_rows_pad + n_cols_pad)),
    )

    per_anchor = pl.pallas_call(
        kernel,
        out_shape=jax.ShapeDtypeStruct((n_rows_pad, 1), jnp.float32),
        grid_spec=pltpu.PrefetchScalarGridSpec(
            num_scalar_prefetch=0,
            grid=(n_rows_pad // tm, n_cols_pad // tn),
            in_specs=[
                pl.BlockSpec((tm, dim), lambda i, j: (i, 0)),   # anchors (pre-scaled)
                pl.BlockSpec((tn, dim), lambda i, j: (j, 0)),   # contrast cols
                pl.BlockSpec((tm, 1), lambda i, j: (i, 0)),     # row pseudo-labels
                pl.BlockSpec((1, tn), lambda i, j: (0, j)),     # col pseudo-labels
                pl.BlockSpec((tm, 1), lambda i, j: (i, 0)),     # positives per anchor
            ],
            out_specs=pl.BlockSpec((tm, 1), lambda i, j: (i, 0)),
            scratch_shapes=[pltpu.VMEM((tm, 1), jnp.float32)] * 3,
        ),
        compiler_params=pltpu.CompilerParams(
            dimension_semantics=("parallel", "arbitrary"),
            vmem_limit_bytes=32 * 1024 * 1024),
        cost_estimate=cost,
    )(q_arr, k_arr, row_lab, col_lab, cnt_arr)

    # mean over the n_views * bsz real anchors (padded rows sliced away)
    return jnp.sum(per_anchor[:n, 0]) / n


def _supcon_loss_ref(features, labels=None, temperature=0.07, base_temperature=0.07):
    """Pure-JAX reference mirroring the PyTorch code (contrast_mode='all')."""
    bsz, n_views, _ = features.shape
    if labels is None:
        mask = jnp.eye(bsz, dtype=jnp.float32)
    else:
        labels = jnp.asarray(labels).reshape(-1, 1)
        mask = (labels == labels.T).astype(jnp.float32)
    cf = jnp.concatenate([features[:, v, :] for v in range(n_views)], 0).astype(jnp.float32)
    n = n_views * bsz
    adc = (cf @ cf.T) / temperature
    logits = adc - jnp.max(adc, axis=1, keepdims=True)
    logits_mask = 1.0 - jnp.eye(n, dtype=jnp.float32)
    mask = jnp.tile(mask, (n_views, n_views)) * logits_mask
    exp_logits = jnp.exp(logits) * logits_mask
    log_prob = logits - jnp.log(exp_logits.sum(1, keepdims=True))
    mean_log_prob_pos = (mask * log_prob).sum(1) / (mask.sum(1) + 1e-8)
    loss = -(temperature / base_temperature) * mean_log_prob_pos
    return loss.reshape(n_views, bsz).mean()


if __name__ == "__main__":
    key = jax.random.PRNGKey(0)
    bsz, n_views, dim = 8, 2, 32
    k1, k2, k3, k4 = jax.random.split(key, 4)
    feats = jax.random.normal(k1, (bsz, n_views, dim), dtype=jnp.float32)
    # SupCon features are conventionally L2-normalized
    feats = feats / jnp.linalg.norm(feats, axis=-1, keepdims=True)

    # exact path (compute_dtype=None keeps f32 feature tiles), labels=None
    loss_f32 = jax.block_until_ready(supcon_loss(feats, compute_dtype=None))
    ref = _supcon_loss_ref(feats)
    assert jnp.allclose(loss_f32, ref, rtol=1e-4, atol=1e-4), (loss_f32, ref)

    # default bf16 MXU path (f32 accumulation) -> looser tolerance vs f32 reference
    loss_bf16 = jax.block_until_ready(supcon_loss(feats))
    assert jnp.allclose(loss_bf16, ref, rtol=5e-2, atol=5e-2), (loss_bf16, ref)

    # labels path (class-based positives)
    labels = jax.random.randint(k2, (bsz,), 0, 3)
    loss_l = jax.block_until_ready(supcon_loss(feats, labels=labels))
    ref_l = _supcon_loss_ref(feats, labels=labels)
    assert jnp.allclose(loss_l, ref_l, rtol=5e-2, atol=5e-2), (loss_l, ref_l)

    # opt-in normalized-features fast path (features above are L2-normalized)
    loss_nrm = jax.block_until_ready(
        supcon_loss(feats, labels=labels, assume_normalized=True))
    assert jnp.allclose(loss_nrm, ref_l, rtol=5e-2, atol=5e-2), (loss_nrm, ref_l)

    # larger case exercising the tm=512/tn=256 tiling and both pl.when branches
    # (diagonal-touching tiles vs. diagonal-free fast-path tiles)
    bsz2, dim2 = 512, 32
    f2 = jax.random.normal(k3, (bsz2, n_views, dim2), dtype=jnp.float32)
    f2 = f2 / jnp.linalg.norm(f2, axis=-1, keepdims=True)
    lab2 = jax.random.randint(k4, (bsz2,), 0, 3)
    loss_big = jax.block_until_ready(supcon_loss(f2, labels=lab2))
    ref_big = _supcon_loss_ref(f2, labels=lab2)
    assert jnp.allclose(loss_big, ref_big, rtol=5e-2, atol=5e-2), (loss_big, ref_big)

    print("KERNEL_OK")
</pallas_src>

<mosaic_0001>
module attributes {stable_mosaic.version = 11 : i64} {
  func.func @_supcon_kernel(%arg0: i32, %arg1: i32, %arg2: memref<8x32xf32, #tpu.memory_space<vmem>>, %arg3: memref<128x32xf32, #tpu.memory_space<vmem>>, %arg4: memref<8x1xi32, #tpu.memory_space<vmem>>, %arg5: memref<1x128xi32, #tpu.memory_space<vmem>>, %arg6: memref<8x1xf32, #tpu.memory_space<vmem>>, %arg7: memref<8x1xf32, #tpu.memory_space<vmem>>, %arg8: memref<8x1xf32, #tpu.memory_space<vmem>>, %arg9: memref<8x1xf32, #tpu.memory_space<vmem>>, %arg10: memref<8x1xf32, #tpu.memory_space<vmem>>) attributes {dimension_semantics = [#tpu.dimension_semantics<parallel>, #tpu.dimension_semantics<arbitrary>], iteration_bounds = array<i64: 2, 1>, scalar_prefetch = 0 : i64, scratch_operands = 3 : i64, tpu.core_type = #tpu.core_type<tc>, window_params = [{transform_indices = @transform_0, window_bounds = array<i64: 8, 32>}, {transform_indices = @transform_1, window_bounds = array<i64: 128, 32>}, {transform_indices = @transform_2, window_bounds = array<i64: 8, 1>}, {transform_indices = @transform_3, window_bounds = array<i64: 1, 128>}, {transform_indices = @transform_4, window_bounds = array<i64: 8, 1>}, {transform_indices = @transform_5, window_bounds = array<i64: 8, 1>}]} {
    %c0_i32 = arith.constant 0 : i32
    %0 = arith.cmpi eq, %arg1, %c0_i32 : i32
    %1 = arith.extui %0 : i1 to i32
    %c0_i32_0 = arith.constant 0 : i32
    %2 = arith.cmpi ne, %1, %c0_i32_0 : i32
    scf.if %2 {
      %cst_17 = arith.constant 0xFF800000 : f32
      %32 = vector.broadcast %cst_17 : f32 to vector<8x1xf32>
      %c0_18 = arith.constant 0 : index
      %c0_19 = arith.constant 0 : index
      %33 = vector.load %arg8[%c0_18, %c0_19] : memref<8x1xf32, #tpu.memory_space<vmem>>, vector<8x1xf32>
      tpu.vector_store %arg8[%c0_18, %c0_19], %32 {strides = array<i32>} : memref<8x1xf32, #tpu.memory_space<vmem>>, vector<8x1xf32>,
      %cst_20 = arith.constant 0.000000e+00 : f32
      %34 = vector.broadcast %cst_20 : f32 to vector<8x1xf32>
      %c0_21 = arith.constant 0 : index
      %c0_22 = arith.constant 0 : index
      %35 = vector.load %arg9[%c0_21, %c0_22] : memref<8x1xf32, #tpu.memory_space<vmem>>, vector<8x1xf32>
      tpu.vector_store %arg9[%c0_21, %c0_22], %34 {strides = array<i32>} : memref<8x1xf32, #tpu.memory_space<vmem>>, vector<8x1xf32>,
      %cst_23 = arith.constant 0.000000e+00 : f32
      %36 = vector.broadcast %cst_23 : f32 to vector<8x1xf32>
      %c0_24 = arith.constant 0 : index
      %c0_25 = arith.constant 0 : index
      %37 = vector.load %arg10[%c0_24, %c0_25] : memref<8x1xf32, #tpu.memory_space<vmem>>, vector<8x1xf32>
      tpu.vector_store %arg10[%c0_24, %c0_25], %36 {strides = array<i32>} : memref<8x1xf32, #tpu.memory_space<vmem>>, vector<8x1xf32>,
    } else {
    }
    %c0 = arith.constant 0 : index
    %c0_1 = arith.constant 0 : index
    %3 = vector.load %arg2[%c0, %c0_1] : memref<8x32xf32, #tpu.memory_space<vmem>>, vector<8x32xf32>
    %c0_2 = arith.constant 0 : index
    %c0_3 = arith.constant 0 : index
    %4 = vector.load %arg3[%c0_2, %c0_3] : memref<128x32xf32, #tpu.memory_space<vmem>>, vector<128x32xf32>
    %cst = arith.constant dense<0.000000e+00> : vector<8x128xf32>
    %5 = tpu.matmul %3, %4, %cst {dimension_numbers = #tpu.dot_dimension_numbers<[1], [1], [0], [0], [0, 0, 1, 0], [], []>} : vector<8x32xf32>, vector<128x32xf32>, vector<8x128xf32> -> vector<8x128xf32>
    %c0_4 = arith.constant 0 : index
    %c0_5 = arith.constant 0 : index
    %6 = vector.load %arg4[%c0_4, %c0_5] : memref<8x1xi32, #tpu.memory_space<vmem>>, vector<8x1xi32>
    %c0_6 = arith.constant 0 : index
    %c0_7 = arith.constant 0 : index
    %7 = vector.load %arg5[%c0_6, %c0_7] : memref<1x128xi32, #tpu.memory_space<vmem>>, vector<1x128xi32>
    %8 = vector.broadcast %6 : vector<8x1xi32> to vector<8x128xi32>
    %9 = vector.broadcast %7 : vector<1x128xi32> to vector<8x128xi32>
    %10 = arith.cmpi eq, %8, %9 : vector<8x128xi32>
    %c128_i32 = arith.constant 128 : i32
    %11 = arith.muli %arg1, %c128_i32 : i32
    %c1_i32 = arith.constant 1 : i32
    %12 = arith.addi %arg0, %c1_i32 : i32
    %c8_i32 = arith.constant 8 : i32
    %13 = arith.muli %12, %c8_i32 : i32
    %14 = arith.cmpi slt, %11, %13 : i32
    %c8_i32_8 = arith.constant 8 : i32
    %15 = arith.muli %arg0, %c8_i32_8 : i32
    %c1_i32_9 = arith.constant 1 : i32
    %16 = arith.addi %arg1, %c1_i32_9 : i32
    %c128_i32_10 = arith.constant 128 : i32
    %17 = arith.muli %16, %c128_i32_10 : i32
    %18 = arith.cmpi slt, %15, %17 : i32
    %19 = arith.andi %14, %18 : i1
    %c1_i32_11 = arith.constant 1 : i32
    %20 = arith.addi %arg1, %c1_i32_11 : i32
    %c128_i32_12 = arith.constant 128 : i32
    %21 = arith.muli %20, %c128_i32_12 : i32
    %c16_i32 = arith.constant 16 : i32
    %22 = arith.cmpi sgt, %21, %c16_i32 : i32
    %23 = arith.ori %19, %22 : i1
    %24 = arith.extui %23 : i1 to i32
    %c0_i32_13 = arith.constant 0 : i32
    %25 = arith.cmpi ne, %24, %c0_i32_13 : i32
    scf.if %25 {
      %c8_i32_17 = arith.constant 8 : i32
      %32 = arith.muli %arg0, %c8_i32_17 : i32
      %33 = tpu.iota {dimensions = array<i32: 0>} : vector<8x128xi32>
      %34 = vector.broadcast %32 : i32 to vector<8x128xi32>
      %35 = arith.addi %34, %33 : vector<8x128xi32>
      %c128_i32_18 = arith.constant 128 : i32
      %36 = arith.muli %arg1, %c128_i32_18 : i32
      %37 = tpu.iota {dimensions = array<i32: 1>} : vector<8x128xi32>
      %38 = vector.broadcast %36 : i32 to vector<8x128xi32>
      %39 = arith.addi %38, %37 : vector<8x128xi32>
      %40 = arith.cmpi ne, %35, %39 : vector<8x128xi32>
      %c0_19 = arith.constant 0 : index
      %c0_20 = arith.constant 0 : index
      %41 = vector.load %arg5[%c0_19, %c0_20] : memref<1x128xi32, #tpu.memory_space<vmem>>, vector<1x128xi32>
      %c0_i32_21 = arith.constant 0 : i32
      %42 = vector.broadcast %c0_i32_21 : i32 to vector<1x128xi32>
      %43 = arith.cmpi sge, %41, %42 : vector<1x128xi32>
      %44 = vector.broadcast %43 : vector<1x128xi1> to vector<8x128xi1>
      %45 = arith.andi %40, %44 : vector<8x128xi1>
      %46 = arith.andi %10, %40 : vector<8x128xi1>
      %47 = arith.extui %46 : vector<8x128xi1> to vector<8x128xi32>
      %48 = arith.sitofp %47 : vector<8x128xi32> to vector<8x128xf32>
      %cst_22 = arith.constant dense<0xFF800000> : vector<8xf32>
      %49 = vector.multi_reduction <maximumf>, %5, %cst_22 [1] : vector<8x128xf32> to vector<8xf32>
      %50 = vector.shape_cast %49 : vector<8xf32> to vector<8x1xf32>
      %c0_23 = arith.constant 0 : index
      %c0_24 = arith.constant 0 : index
      %51 = vector.load %arg8[%c0_23, %c0_24] : memref<8x1xf32, #tpu.memory_space<vmem>>, vector<8x1xf32>
      %52 = arith.maximumf %51, %50 : vector<8x1xf32>
      %cst_25 = arith.constant 0xFF800000 : f32
      %53 = vector.broadcast %cst_25 : f32 to vector<8x128xf32>
      %54 = arith.select %45, %5, %53 : vector<8x128xi1>, vector<8x128xf32>
      %55 = vector.broadcast %52 : vector<8x1xf32> to vector<8x128xf32>
      %56 = arith.subf %54, %55 : vector<8x128xf32>
      %57 = math.exp %56 : vector<8x128xf32>
      %58 = arith.subf %51, %52 : vector<8x1xf32>
      %59 = math.exp %58 : vector<8x1xf32>
      %c0_26 = arith.constant 0 : index
      %c0_27 = arith.constant 0 : index
      %60 = vector.load %arg9[%c0_26, %c0_27] : memref<8x1xf32, #tpu.memory_space<vmem>>, vector<8x1xf32>
      %61 = arith.mulf %59, %60 : vector<8x1xf32>
      %cst_28 = arith.constant dense<0.000000e+00> : vector<8xf32>
      %62 = vector.multi_reduction <add>, %57, %cst_28 [1] : vector<8x128xf32> to vector<8xf32>
      %63 = vector.shape_cast %62 : vector<8xf32> to vector<8x1xf32>
      %64 = arith.addf %61, %63 : vector<8x1xf32>
      %c0_29 = arith.constant 0 : index
      %c0_30 = arith.constant 0 : index
      %65 = vector.load %arg9[%c0_29, %c0_30] : memref<8x1xf32, #tpu.memory_space<vmem>>, vector<8x1xf32>
      tpu.vector_store %arg9[%c0_29, %c0_30], %64 {strides = array<i32>} : memref<8x1xf32, #tpu.memory_space<vmem>>, vector<8x1xf32>,
      %c0_31 = arith.constant 0 : index
      %c0_32 = arith.constant 0 : index
      %66 = vector.load %arg8[%c0_31, %c0_32] : memref<8x1xf32, #tpu.memory_space<vmem>>, vector<8x1xf32>
      tpu.vector_store %arg8[%c0_31, %c0_32], %52 {strides = array<i32>} : memref<8x1xf32, #tpu.memory_space<vmem>>, vector<8x1xf32>,
      %c0_33 = arith.constant 0 : index
      %c0_34 = arith.constant 0 : index
      %67 = vector.load %arg10[%c0_33, %c0_34] : memref<8x1xf32, #tpu.memory_space<vmem>>, vector<8x1xf32>
      %68 = arith.mulf %48, %5 : vector<8x128xf32>
      %cst_35 = arith.constant dense<0.000000e+00> : vector<8xf32>
      %69 = vector.multi_reduction <add>, %68, %cst_35 [1] : vector<8x128xf32> to vector<8xf32>
      %70 = vector.shape_cast %69 : vector<8xf32> to vector<8x1xf32>
      %71 = arith.addf %67, %70 : vector<8x1xf32>
      %c0_36 = arith.constant 0 : index
      %c0_37 = arith.constant 0 : index
      %72 = vector.load %arg10[%c0_36, %c0_37] : memref<8x1xf32, #tpu.memory_space<vmem>>, vector<8x1xf32>
      tpu.vector_store %arg10[%c0_36, %c0_37], %71 {strides = array<i32>} : memref<8x1xf32, #tpu.memory_space<vmem>>, vector<8x1xf32>,
    } else {
    }
    %true = arith.constant true
    %26 = arith.xori %23, %true : i1
    %27 = arith.extui %26 : i1 to i32
    %c0_i32_14 = arith.constant 0 : i32
    %28 = arith.cmpi ne, %27, %c0_i32_14 : i32
    scf.if %28 {
      %32 = arith.extui %10 : vector<8x128xi1> to vector<8x128xi32>
      %33 = arith.sitofp %32 : vector<8x128xi32> to vector<8x128xf32>
      %cst_17 = arith.constant dense<0xFF800000> : vector<8xf32>
      %34 = vector.multi_reduction <maximumf>, %5, %cst_17 [1] : vector<8x128xf32> to vector<8xf32>
      %35 = vector.shape_cast %34 : vector<8xf32> to vector<8x1xf32>
      %c0_18 = arith.constant 0 : index
      %c0_19 = arith.constant 0 : index
      %36 = vector.load %arg8[%c0_18, %c0_19] : memref<8x1xf32, #tpu.memory_space<vmem>>, vector<8x1xf32>
      %37 = arith.maximumf %36, %35 : vector<8x1xf32>
      %38 = vector.broadcast %37 : vector<8x1xf32> to vector<8x128xf32>
      %39 = arith.subf %5, %38 : vector<8x128xf32>
      %40 = math.exp %39 : vector<8x128xf32>
      %41 = arith.subf %36, %37 : vector<8x1xf32>
      %42 = math.exp %41 : vector<8x1xf32>
      %c0_20 = arith.constant 0 : index
      %c0_21 = arith.constant 0 : index
      %43 = vector.load %arg9[%c0_20, %c0_21] : memref<8x1xf32, #tpu.memory_space<vmem>>, vector<8x1xf32>
      %44 = arith.mulf %42, %43 : vector<8x1xf32>
      %cst_22 = arith.constant dense<0.000000e+00> : vector<8xf32>
      %45 = vector.multi_reduction <add>, %40, %cst_22 [1] : vector<8x128xf32> to vector<8xf32>
      %46 = vector.shape_cast %45 : vector<8xf32> to vector<8x1xf32>
      %47 = arith.addf %44, %46 : vector<8x1xf32>
      %c0_23 = arith.constant 0 : index
      %c0_24 = arith.constant 0 : index
      %48 = vector.load %arg9[%c0_23, %c0_24] : memref<8x1xf32, #tpu.memory_space<vmem>>, vector<8x1xf32>
      tpu.vector_store %arg9[%c0_23, %c0_24], %47 {strides = array<i32>} : memref<8x1xf32, #tpu.memory_space<vmem>>, vector<8x1xf32>,
      %c0_25 = arith.constant 0 : index
      %c0_26 = arith.constant 0 : index
      %49 = vector.load %arg8[%c0_25, %c0_26] : memref<8x1xf32, #tpu.memory_space<vmem>>, vector<8x1xf32>
      tpu.vector_store %arg8[%c0_25, %c0_26], %37 {strides = array<i32>} : memref<8x1xf32, #tpu.memory_space<vmem>>, vector<8x1xf32>,
      %c0_27 = arith.constant 0 : index
      %c0_28 = arith.constant 0 : index
      %50 = vector.load %arg10[%c0_27, %c0_28] : memref<8x1xf32, #tpu.memory_space<vmem>>, vector<8x1xf32>
      %51 = arith.mulf %33, %5 : vector<8x128xf32>
      %cst_29 = arith.constant dense<0.000000e+00> : vector<8xf32>
      %52 = vector.multi_reduction <add>, %51, %cst_29 [1] : vector<8x128xf32> to vector<8xf32>
      %53 = vector.shape_cast %52 : vector<8xf32> to vector<8x1xf32>
      %54 = arith.addf %50, %53 : vector<8x1xf32>
      %c0_30 = arith.constant 0 : index
      %c0_31 = arith.constant 0 : index
      %55 = vector.load %arg10[%c0_30, %c0_31] : memref<8x1xf32, #tpu.memory_space<vmem>>, vector<8x1xf32>
      tpu.vector_store %arg10[%c0_30, %c0_31], %54 {strides = array<i32>} : memref<8x1xf32, #tpu.memory_space<vmem>>, vector<8x1xf32>,
    } else {
    }
    %c0_i32_15 = arith.constant 0 : i32
    %29 = arith.cmpi eq, %arg1, %c0_i32_15 : i32
    %30 = arith.extui %29 : i1 to i32
    %c0_i32_16 = arith.constant 0 : i32
    %31 = arith.cmpi ne, %30, %c0_i32_16 : i32
    scf.if %31 {
      %c0_17 = arith.constant 0 : index
      %c0_18 = arith.constant 0 : index
      %32 = vector.load %arg6[%c0_17, %c0_18] : memref<8x1xf32, #tpu.memory_space<vmem>>, vector<8x1xf32>
      %c0_19 = arith.constant 0 : index
      %c0_20 = arith.constant 0 : index
      %33 = vector.load %arg8[%c0_19, %c0_20] : memref<8x1xf32, #tpu.memory_space<vmem>>, vector<8x1xf32>
      %c0_21 = arith.constant 0 : index
      %c0_22 = arith.constant 0 : index
      %34 = vector.load %arg9[%c0_21, %c0_22] : memref<8x1xf32, #tpu.memory_space<vmem>>, vector<8x1xf32>
      %35 = math.log %34 : vector<8x1xf32>
      %36 = arith.addf %33, %35 : vector<8x1xf32>
      %c0_23 = arith.constant 0 : index
      %c0_24 = arith.constant 0 : index
      %37 = vector.load %arg10[%c0_23, %c0_24] : memref<8x1xf32, #tpu.memory_space<vmem>>, vector<8x1xf32>
      %38 = arith.mulf %32, %36 : vector<8x1xf32>
      %39 = arith.subf %37, %38 : vector<8x1xf32>
      %cst_25 = arith.constant 9.99999993E-9 : f32
      %40 = vector.broadcast %cst_25 : f32 to vector<8x1xf32>
      %41 = arith.addf %32, %40 : vector<8x1xf32>
      %42 = tpu.reciprocal %41 : vector<8x1xf32> -> vector<8x1xf32>
      %43 = arith.mulf %39, %42 : vector<8x1xf32>
      %cst_26 = arith.constant -1.000000e+00 : f32
      %44 = vector.broadcast %cst_26 : f32 to vector<8x1xf32>
      %45 = arith.mulf %44, %43 : vector<8x1xf32>
      %c0_27 = arith.constant 0 : index
      %c0_28 = arith.constant 0 : index
      %46 = vector.load %arg7[%c0_27, %c0_28] : memref<8x1xf32, #tpu.memory_space<vmem>>, vector<8x1xf32>
      tpu.vector_store %arg7[%c0_27, %c0_28], %45 {strides = array<i32>} : memref<8x1xf32, #tpu.memory_space<vmem>>, vector<8x1xf32>,
    } else {
    }
    return
  }
  func.func @transform_0(%arg0: i32, %arg1: i32) -> (i32, i32) {
    %c0_i32 = arith.constant 0 : i32
    %c0_i32_0 = arith.constant 0 : i32
    return %arg0, %c0_i32 : i32, i32
  }
  func.func @transform_1(%arg0: i32, %arg1: i32) -> (i32, i32) {
    %c0_i32 = arith.constant 0 : i32
    %c0_i32_0 = arith.constant 0 : i32
    return %arg1, %c0_i32 : i32, i32
  }
  func.func @transform_2(%arg0: i32, %arg1: i32) -> (i32, i32) {
    %c0_i32 = arith.constant 0 : i32
    %c0_i32_0 = arith.constant 0 : i32
    return %arg0, %c0_i32 : i32, i32
  }
  func.func @transform_3(%arg0: i32, %arg1: i32) -> (i32, i32) {
    %c0_i32 = arith.constant 0 : i32
    %c0_i32_0 = arith.constant 0 : i32
    return %c0_i32, %arg1 : i32, i32
  }
  func.func @transform_4(%arg0: i32, %arg1: i32) -> (i32, i32) {
    %c0_i32 = arith.constant 0 : i32
    %c0_i32_0 = arith.constant 0 : i32
    return %arg0, %c0_i32 : i32, i32
  }
  func.func @transform_5(%arg0: i32, %arg1: i32) -> (i32, i32) {
    %c0_i32 = arith.constant 0 : i32
    %c0_i32_0 = arith.constant 0 : i32
    return %arg0, %c0_i32 : i32, i32
  }
}

</mosaic_0001>

<llo_original>
// kernel: tpu_custom_call.1
$region0: #{tpu_custom_call.1}
  #allocation0 [shape = 'u32[]', space=smem, size = 0x4, offset = 0x4, fixed_abs, tag = 'smem constant byte address 0x4 - core index']
  #allocation1 [shape = 'u32[144,128]{1,0:T(1,128)}', space=vmem, size = 0x12000, scoped, tag = 'internal scratch']
  #allocation2 [shape = 'f32[8,1]{1,0:T(8,128)}', space=vmem, size = 0x1000, scoped, tag = 'scratch operand']
  #allocation3 [shape = 'f32[8,1]{1,0:T(8,128)}', space=vmem, size = 0x1000, scoped, tag = 'scratch operand']
  #allocation4 [shape = 'f32[8,1]{1,0:T(8,128)}', space=vmem, size = 0x1000, scoped, tag = 'scratch operand']
  %s0 = inlined_call_operand.vmem [shape: f32[16,32], index: 0, kind: input, shape index: {}]
  %s1 = inlined_call_operand.vmem [shape: f32[128,32], index: 1, kind: input, shape index: {}]
  %s2 = inlined_call_operand.vmem [shape: s32[16,1], index: 2, kind: input, shape index: {}]
  %s3 = inlined_call_operand.vmem [shape: s32[1,128], index: 3, kind: input, shape index: {}]
  %s4 = inlined_call_operand.vmem [shape: f32[16,1], index: 4, kind: input, shape index: {}]
  %s5 = inlined_call_operand.vmem [shape: f32[16,1], index: 5, kind: output, shape index: {}]
  %s6 = sld [smem:[#allocation0]]
  $region69: #{tpu_custom_call.1} parent=0
    _
  %s8 = ssub.s32 1, %s6
  %s9 = scalar_select 0, %s8, %s6
  loop: start=0, step=1, limit=4
  $region2: #{tpu_custom_call.1} parent=0 // loop_pre_header
    _
  $region3: #{tpu_custom_call.1} parent=0 // loop_header
    %s11 = sphi 0, %s15
    %p12 = scmp.ge.s32.totalorder %s11, 4
    %s18 = sphi 0, %s30
    %s19 = sphi 0, %s26
    %s20 = sphi 0, %s18
    %s21 = sphi 0, %s19
    %s22 = sphi 0, %s20
    %s23 = sphi 0, %s21
    %s33 = sphi 0, %s35
    %s36 = sphi 0, %s33
    %s37 = sphi 0, %s36
    %s53 = sphi 0, %s37
    %s59 = sphi 0, %s61
    %s62 = sphi 0, %s59
    %s63 = sphi 0, %s62
    %s79 = sphi 0, %s63
    %s85 = sphi 0, %s87
    %s88 = sphi 0, %s85
    %s89 = sphi 0, %s88
    %s105 = sphi 0, %s89
    %s111 = sphi 0, %s113
    %s114 = sphi 0, %s111
    %s115 = sphi 0, %s114
    %s131 = sphi 0, %s115
    %s137 = sphi 0, %s139
    %s140 = sphi 0, %s137
    %s141 = sphi 0, %s140
    %s157 = sphi 0, %s141
    %s163 = sphi 0, %s165
    %s166 = sphi 0, %s163
    %s167 = sphi 0, %s166
    %s183 = sphi 0, %s167
  $region4: #{tpu_custom_call.1} parent=0 // loop_header_branch
    %14 = sbr.rel (%p12) target = $region8
  $region5: #{tpu_custom_call.1} parent=0 // loop_body
    %s16 = ssub.s32 %s11, 1
    %s17 = ssub.s32 %s11, 2
    %s24 = sadd.s32 1, %s19
    %p25 = scmp.ge.s32.totalorder %s24, 1
    %s26 = scalar_select %p25, 0, %s24
    %s27 = sadd.s32 1, %s18
    %s28 = scalar_select %p25, %s27, %s18
    %p29 = scmp.ge.s32.totalorder %s28, 2
    %s30 = scalar_select %p29, 0, %s28
    %s31 = ssub.s32 %s18, %s30
    %p32 = scmp.eq.s32.totalorder %s31, 0
    %s34 = sadd.s32 %s33, 1
    %s35 = scalar_select %p32, %s33, %s34
    %p38 = pneg %p32
    %p39 = scmp.eq.s32.totalorder %s11, 1
    %p40 = por %p38, %p39
    %p41 = scmp.ne.s32.totalorder %s33, %s36
    %p42 = scmp.eq.s32.totalorder %s11, 0
    %p43 = por %p41, %p42
    %p44 = scmp.ne.s32.totalorder %s33, %s36
    %p45 = scmp.eq.s32.totalorder %s16, 1
    %p46 = por %p44, %p45
    %p47 = scmp.ne.s32.totalorder %s36, %s37
    %p48 = scmp.eq.s32.totalorder %s16, 0
    %p49 = por %p47, %p48
    %p50 = scmp.ne.s32.totalorder %s36, %s37
    %p51 = scmp.eq.s32.totalorder %s17, 1
    %p52 = por %p50, %p51
    %p54 = scmp.ne.s32.totalorder %s37, %s53
    %p55 = scmp.eq.s32.totalorder %s17, 0
    %p56 = por %p54, %p55
    %s57 = ssub.s32 %s19, %s26
    %p58 = scmp.eq.s32.totalorder %s57, 0
    %s60 = sadd.s32 %s59, 1
    %s61 = scalar_select %p58, %s59, %s60
    %p64 = pneg %p58
    %p65 = scmp.eq.s32.totalorder %s11, 1
    %p66 = por %p64, %p65
    %p67 = scmp.ne.s32.totalorder %s59, %s62
    %p68 = scmp.eq.s32.totalorder %s11, 0
    %p69 = por %p67, %p68
    %p70 = scmp.ne.s32.totalorder %s59, %s62
    %p71 = scmp.eq.s32.totalorder %s16, 1
    %p72 = por %p70, %p71
    %p73 = scmp.ne.s32.totalorder %s62, %s63
    %p74 = scmp.eq.s32.totalorder %s16, 0
    %p75 = por %p73, %p74
    %p76 = scmp.ne.s32.totalorder %s62, %s63
    %p77 = scmp.eq.s32.totalorder %s17, 1
    %p78 = por %p76, %p77
    %p80 = scmp.ne.s32.totalorder %s63, %s79
    %p81 = scmp.eq.s32.totalorder %s17, 0
    %p82 = por %p80, %p81
    %s83 = ssub.s32 %s18, %s30
    %p84 = scmp.eq.s32.totalorder %s83, 0
    %s86 = sadd.s32 %s85, 1
    %s87 = scalar_select %p84, %s85, %s86
    %p90 = pneg %p84
    %p91 = scmp.eq.s32.totalorder %s11, 1
    %p92 = por %p90, %p91
    %p93 = scmp.ne.s32.totalorder %s85, %s88
    %p94 = scmp.eq.s32.totalorder %s11, 0
    %p95 = por %p93, %p94
    %p96 = scmp.ne.s32.totalorder %s85, %s88
    %p97 = scmp.eq.s32.totalorder %s16, 1
    %p98 = por %p96, %p97
    %p99 = scmp.ne.s32.totalorder %s88, %s89
    %p100 = scmp.eq.s32.totalorder %s16, 0
    %p101 = por %p99, %p100
    %p102 = scmp.ne.s32.totalorder %s88, %s89
    %p103 = scmp.eq.s32.totalorder %s17, 1
    %p104 = por %p102, %p103
    %p106 = scmp.ne.s32.totalorder %s89, %s105
    %p107 = scmp.eq.s32.totalorder %s17, 0
    %p108 = por %p106, %p107
    %s109 = ssub.s32 %s19, %s26
    %p110 = scmp.eq.s32.totalorder %s109, 0
    %s112 = sadd.s32 %s111, 1
    %s113 = scalar_select %p110, %s111, %s112
    %p116 = pneg %p110
    %p117 = scmp.eq.s32.totalorder %s11, 1
    %p118 = por %p116, %p117
    %p119 = scmp.ne.s32.totalorder %s111, %s114
    %p120 = scmp.eq.s32.totalorder %s11, 0
    %p121 = por %p119, %p120
    %p122 = scmp.ne.s32.totalorder %s111, %s114
    %p123 = scmp.eq.s32.totalorder %s16, 1
    %p124 = por %p122, %p123
    %p125 = scmp.ne.s32.totalorder %s114, %s115
    %p126 = scmp.eq.s32.totalorder %s16, 0
    %p127 = por %p125, %p126
    %p128 = scmp.ne.s32.totalorder %s114, %s115
    %p129 = scmp.eq.s32.totalorder %s17, 1
    %p130 = por %p128, %p129
    %p132 = scmp.ne.s32.totalorder %s115, %s131
    %p133 = scmp.eq.s32.totalorder %s17, 0
    %p134 = por %p132, %p133
    %s135 = ssub.s32 %s18, %s30
    %p136 = scmp.eq.s32.totalorder %s135, 0
    %s138 = sadd.s32 %s137, 1
    %s139 = scalar_select %p136, %s137, %s138
    %p142 = pneg %p136
    %p143 = scmp.eq.s32.totalorder %s11, 1
    %p144 = por %p142, %p143
    %p145 = scmp.ne.s32.totalorder %s137, %s140
    %p146 = scmp.eq.s32.totalorder %s11, 0
    %p147 = por %p145, %p146
    %p148 = scmp.ne.s32.totalorder %s137, %s140
    %p149 = scmp.eq.s32.totalorder %s16, 1
    %p150 = por %p148, %p149
    %p151 = scmp.ne.s32.totalorder %s140, %s141
    %p152 = scmp.eq.s32.totalorder %s16, 0
    %p153 = por %p151, %p152
    %p154 = scmp.ne.s32.totalorder %s140, %s141
    %p155 = scmp.eq.s32.totalorder %s17, 1
    %p156 = por %p154, %p155
    %p158 = scmp.ne.s32.totalorder %s141, %s157
    %p159 = scmp.eq.s32.totalorder %s17, 0
    %p160 = por %p158, %p159
    %s161 = ssub.s32 %s18, %s30
    %p162 = scmp.eq.s32.totalorder %s161, 0
    %s164 = sadd.s32 %s163, 1
    %s165 = scalar_select %p162, %s163, %s164
    %p168 = pneg %p162
    %p169 = scmp.eq.s32.totalorder %s11, 1
    %p170 = por %p168, %p169
    %p171 = scmp.ne.s32.totalorder %s163, %s166
    %p172 = scmp.eq.s32.totalorder %s11, 0
    %p173 = por %p171, %p172
    %p174 = scmp.ne.s32.totalorder %s163, %s166
    %p175 = scmp.eq.s32.totalorder %s16, 1
    %p176 = por %p174, %p175
    %p177 = scmp.ne.s32.totalorder %s166, %s167
    %p178 = scmp.eq.s32.totalorder %s16, 0
    %p179 = por %p177, %p178
    %p180 = scmp.ne.s32.totalorder %s166, %s167
    %p181 = scmp.eq.s32.totalorder %s17, 1
    %p182 = por %p180, %p181
    %p184 = scmp.ne.s32.totalorder %s167, %s183
    %p185 = scmp.eq.s32.totalorder %s17, 0
    %p186 = por %p184, %p185
    %p187 = scmp.le.s32.totalorder 1, %s11
    %p188 = scmp.lt.s32.totalorder %s11, 3
    %p189 = pnand %p187, %p188
    %p190 = pneg %p189
    // Predicated region
    $region9: #{tpu_custom_call.1} parent=5 // pred_check
      _
    $region10: #{tpu_custom_call.1} parent=5 // pred_check_branch
      %192 = sbr.rel (%p189) target = $region12
    $region11: #{tpu_custom_call.1} parent=5 // pred_region
      %s193 = ssub.s32 %s11, 1
      // Predicated region
      $region13: #{tpu_custom_call.1} parent=11 // pred_check
        %p194 = pneg %p75
      $region14: #{tpu_custom_call.1} parent=11 // pred_check_branch
        %196 = sbr.rel (%p194) target = $region16
      $region15: #{tpu_custom_call.1} parent=11 // pred_region
        %s197 = smul.u32 16, %s21
        %p198 = scmp.lt.s32.totalorder %s197, 15
        %s199 = scalar_select %p198, %s197, 15
        %s200 = smul.addr %s199, 8
        %s201 = scalar_lea.vmem %s1, %s200
        %s202 = smul.u32 16, %s21
      $region16: #{tpu_custom_call.1} parent=11 // pred_fallthru
        _
      // Predicated region
      $region17: #{tpu_custom_call.1} parent=11 // pred_check
        %p203 = pneg %p127
      $region18: #{tpu_custom_call.1} parent=11 // pred_check_branch
        %205 = sbr.rel (%p203) target = $region20
      $region19: #{tpu_custom_call.1} parent=11 // pred_region
        %p206 = scmp.lt.s32.totalorder %s21, 0
        %s207 = scalar_select %p206, %s21, 0
        %s208 = scalar_lea.vmem %s3, %s207
      $region20: #{tpu_custom_call.1} parent=11 // pred_fallthru
        _
    $region12: #{tpu_custom_call.1} parent=5 // pred_fallthru
      _
    %p209 = scmp.lt.s32.totalorder %s11, 2
    // Predicated region
    $region21: #{tpu_custom_call.1} parent=5 // pred_check
      %p210 = pneg %p209
    $region22: #{tpu_custom_call.1} parent=5 // pred_check_branch
      %212 = sbr.rel (%p210) target = $region24
    $region23: #{tpu_custom_call.1} parent=5 // pred_region
      // Predicated region
      $region25: #{tpu_custom_call.1} parent=23 // pred_check
        %p213 = pneg %p43
      $region26: #{tpu_custom_call.1} parent=23 // pred_check_branch
        %215 = sbr.rel (%p213) target = $region28
      $region27: #{tpu_custom_call.1} parent=23 // pred_region
        %p216 = scmp.lt.s32.totalorder %s18, 1
        %s217 = scalar_select %p216, %s18, 1
        %s218 = smul.addr %s217, 8
        %s219 = scalar_lea.vmem %s0, %s218
      $region28: #{tpu_custom_call.1} parent=23 // pred_fallthru
        _
      // Predicated region
      $region29: #{tpu_custom_call.1} parent=23 // pred_check
        %p220 = pneg %p95
      $region30: #{tpu_custom_call.1} parent=23 // pred_check_branch
        %222 = sbr.rel (%p220) target = $region32
      $region31: #{tpu_custom_call.1} parent=23 // pred_region
        %p223 = scmp.lt.s32.totalorder %s18, 1
        %s224 = scalar_select %p223, %s18, 1
        %s225 = smul.addr %s224, 8
        %s226 = scalar_lea.vmem %s2, %s225
      $region32: #{tpu_custom_call.1} parent=23 // pred_fallthru
        _
      // Predicated region
      $region33: #{tpu_custom_call.1} parent=23 // pred_check
        %p227 = pneg %p147
      $region34: #{tpu_custom_call.1} parent=23 // pred_check_branch
        %229 = sbr.rel (%p227) target = $region36
      $region35: #{tpu_custom_call.1} parent=23 // pred_region
        %p230 = scmp.lt.s32.totalorder %s18, 1
        %s231 = scalar_select %p230, %s18, 1
        %s232 = smul.addr %s231, 8
        %s233 = scalar_lea.vmem %s4, %s232
      $region36: #{tpu_custom_call.1} parent=23 // pred_fallthru
        _
    $region24: #{tpu_custom_call.1} parent=5 // pred_fallthru
      _
    %p234 = scmp.le.s32.totalorder 1, %s11
    %p235 = scmp.lt.s32.totalorder %s11, 3
    %p236 = pnand %p234, %p235
    %p237 = pneg %p236
    // Predicated region
    $region37: #{tpu_custom_call.1} parent=5 // pred_check
      _
    $region38: #{tpu_custom_call.1} parent=5 // pred_check_branch
      %239 = sbr.rel (%p236) target = $region40
    $region39: #{tpu_custom_call.1} parent=5 // pred_region
      %s240 = ssub.s32 %s11, 1
      %p241 = scmp.lt.s32.totalorder %s20, 1
      %s242 = scalar_select %p241, %s20, 1
      %s243 = smul.addr %s242, 8
      %s244 = scalar_lea.vmem %s0, %s243
      %p245 = pneg %p49
      %p246 = pneg %p46
      %s247 = smul.u32 16, %s21
      %p248 = scmp.lt.s32.totalorder %s247, 15
      %s249 = scalar_select %p248, %s247, 15
      %s250 = smul.addr %s249, 8
      %s251 = scalar_lea.vmem %s1, %s250
      %p252 = pneg %p75
      %p253 = pneg %p72
      %p254 = scmp.lt.s32.totalorder %s20, 1
      %s255 = scalar_select %p254, %s20, 1
      %s256 = smul.addr %s255, 8
      %s257 = scalar_lea.vmem %s2, %s256
      %p258 = pneg %p101
      %p259 = pneg %p98
      %p260 = scmp.lt.s32.totalorder %s21, 0
      %s261 = scalar_select %p260, %s21, 0
      %s262 = scalar_lea.vmem %s3, %s261
      %p263 = pneg %p127
      %p264 = pneg %p124
      %p265 = scmp.lt.s32.totalorder %s20, 1
      %s266 = scalar_select %p265, %s20, 1
      %s267 = smul.addr %s266, 8
      %s268 = scalar_lea.vmem %s4, %s267
      %p269 = pneg %p153
      %p270 = pneg %p150
      %p271 = pneg %p179
      %p272 = pneg %p176
      %p273 = scmp.lt.s32.totalorder %s20, 1
      %s274 = scalar_select %p273, %s20, 1
      %s275 = smul.addr %s274, 8
      %s276 = scalar_lea.vmem %s5, %s275
      %p277 = scmp.lt.s32.totalorder %s20, 1
      %s278 = scalar_select %p277, %s20, 1
      %s279 = smul.addr %s278, 8
      %s280 = scalar_lea.vmem %s0, %s279
      %s281 = smul.u32 16, %s21
      %p282 = scmp.lt.s32.totalorder %s281, 15
      %s283 = scalar_select %p282, %s281, 15
      %s284 = smul.addr %s283, 8
      %s285 = scalar_lea.vmem %s1, %s284
      %s286 = smul.u32 16, %s21
      %p287 = scmp.lt.s32.totalorder %s20, 1
      %s288 = scalar_select %p287, %s20, 1
      %s289 = smul.addr %s288, 8
      %s290 = scalar_lea.vmem %s2, %s289
      %p291 = scmp.lt.s32.totalorder %s21, 0
      %s292 = scalar_select %p291, %s21, 0
      %s293 = scalar_lea.vmem %s3, %s292
      %p294 = scmp.lt.s32.totalorder %s20, 1
      %s295 = scalar_select %p294, %s20, 1
      %s296 = smul.addr %s295, 8
      %s297 = scalar_lea.vmem %s4, %s296
      %p298 = scmp.lt.s32.totalorder %s20, 1
      %s299 = scalar_select %p298, %s20, 1
      %s300 = smul.addr %s299, 8
      %s301 = scalar_lea.vmem %s5, %s300
      %p302 = scmp.eq.s32.totalorder %s21, 0
      // Predicated region
      $region41: #{tpu_custom_call.1} parent=39 // pred_check
        %p303 = pneg %p302
      $region42: #{tpu_custom_call.1} parent=39 // pred_check_branch
        %305 = sbr.rel (%p303) target = $region44
      $region43: #{tpu_custom_call.1} parent=39 // pred_region
        %vm306 = vcmask 7168
        %307 = vst.msk [vmem:[#allocation2] sm:$0xff] %vm306, -inf
        %308 = vst.msk [vmem:[#allocation3] sm:$0xff] %vm306, 0.0
        %309 = vst.msk [vmem:[#allocation4] sm:$0xff] %vm306, 0.0
      $region44: #{tpu_custom_call.1} parent=39 // pred_fallthru
        _
      %v310 = vld [vmem:[%s280] sm:$0xff]
      %v311 = vld [vmem:[%s285] sm:$0xff]
      %v312 = vld [vmem:[%s285 + $0x8] sm:$0xff]
      %v313 = vld [vmem:[%s285 + $0x10] sm:$0xff]
      %v314 = vld [vmem:[%s285 + $0x18] sm:$0xff]
      %v315 = vld [vmem:[%s285 + $0x20] sm:$0xff]
      %v316 = vld [vmem:[%s285 + $0x28] sm:$0xff]
      %v317 = vld [vmem:[%s285 + $0x30] sm:$0xff]
      %v318 = vld [vmem:[%s285 + $0x38] sm:$0xff]
      %v319 = vld [vmem:[%s285 + $0x40] sm:$0xff]
      %v320 = vld [vmem:[%s285 + $0x48] sm:$0xff]
      %v321 = vld [vmem:[%s285 + $0x50] sm:$0xff]
      %v322 = vld [vmem:[%s285 + $0x58] sm:$0xff]
      %v323 = vld [vmem:[%s285 + $0x60] sm:$0xff]
      %v324 = vld [vmem:[%s285 + $0x68] sm:$0xff]
      %v325 = vld [vmem:[%s285 + $0x70] sm:$0xff]
      %v326 = vld [vmem:[%s285 + $0x78] sm:$0xff]
      %vm327 = vcmask 261120
      %v329 = vsel %vm327, %v310, 0
      %v332 = vsel %vm327, %v311, 0
      %v335 = vsel %vm327, %v312, 0
      %v338 = vsel %vm327, %v313, 0
      %v341 = vsel %vm327, %v314, 0
      %v344 = vsel %vm327, %v315, 0
      %v347 = vsel %vm327, %v316, 0
      %v350 = vsel %vm327, %v317, 0
      %v353 = vsel %vm327, %v318, 0
      %v356 = vsel %vm327, %v319, 0
      %v359 = vsel %vm327, %v320, 0
      %v362 = vsel %vm327, %v321, 0
      %v365 = vsel %vm327, %v322, 0
      %v368 = vsel %vm327, %v323, 0
      %v371 = vsel %vm327, %v324, 0
      %v374 = vsel %vm327, %v325, 0
      %v377 = vsel %vm327, %v326, 0
      %379 = vmatprep.subr.mxu0 0.0
      %380 = vmatpush1.xpose.msra.mxu0 %v332
      %381 = vmatprep.subr.mxu0 0.0
      %382 = vmatpush1.xpose.msra.mxu0 %v335
      %383 = vmatprep.subr.mxu0 0.0
      %384 = vmatpush1.xpose.msra.mxu0 %v338
      %385 = vmatprep.subr.mxu0 0.0
      %386 = vmatpush1.xpose.msra.mxu0 %v341
      %387 = vmatprep.subr.mxu0 0.0
      %388 = vmatpush1.xpose.msra.mxu0 %v344
      %389 = vmatprep.subr.mxu0 0.0
      %390 = vmatpush1.xpose.msra.mxu0 %v347
      %391 = vmatprep.subr.mxu0 0.0
      %392 = vmatpush1.xpose.msra.mxu0 %v350
      %393 = vmatprep.subr.mxu0 0.0
      %394 = vmatpush1.xpose.msra.mxu0 %v353
      %395 = vmatprep.subr.mxu0 0.0
      %396 = vmatpush1.xpose.msra.mxu0 %v356
      %397 = vmatprep.subr.mxu0 0.0
      %398 = vmatpush1.xpose.msra.mxu0 %v359
      %399 = vmatprep.subr.mxu0 0.0
      %400 = vmatpush1.xpose.msra.mxu0 %v362
      %401 = vmatprep.subr.mxu0 0.0
      %402 = vmatpush1.xpose.msra.mxu0 %v365
      %403 = vmatprep.subr.mxu0 0.0
      %404 = vmatpush1.xpose.msra.mxu0 %v368
      %405 = vmatprep.subr.mxu0 0.0
      %406 = vmatpush1.xpose.msra.mxu0 %v371
      %407 = vmatprep.subr.mxu0 0.0
      %408 = vmatpush1.xpose.msra.mxu0 %v374
      %409 = vmatprep.subr.mxu0 0.0
      %410 = vmatpush1.xpose.msra.mxu0 %v377
      %411 = vmatprep.subr.mxu0 0.0
      %412 = vmatpush1.xpose.msra.mxu0 0.0
      %413 = vmatprep.subr.mxu0 0.0
      %414 = vmatpush1.xpose.msra.mxu0 0.0
      %415 = vmatprep.subr.mxu0 0.0
      %416 = vmatpush1.xpose.msra.mxu0 0.0
      %417 = vmatprep.subr.mxu0 0.0
      %418 = vmatpush1.xpose.msra.mxu0 0.0
      %419 = vmatprep.subr.mxu0 0.0
      %420 = vmatpush1.xpose.msra.mxu0 0.0
      %421 = vmatprep.subr.mxu0 0.0
      %422 = vmatpush1.xpose.msra.mxu0 0.0
      %423 = vmatprep.subr.mxu0 0.0
      %424 = vmatpush1.xpose.msra.mxu0 0.0
      %425 = vmatprep.subr.mxu0 0.0
      %426 = vmatpush1.xpose.msra.mxu0 0.0
      %427 = vmatprep.subr.mxu0 0.0
      %428 = vmatpush1.xpose.msra.mxu0 0.0
      %429 = vmatprep.subr.mxu0 0.0
      %430 = vmatpush1.xpose.msra.mxu0 0.0
      %431 = vmatprep.subr.mxu0 0.0
      %432 = vmatpush1.xpose.msra.mxu0 0.0
      %433 = vmatprep.subr.mxu0 0.0
      %434 = vmatpush1.xpose.msra.mxu0 0.0
      %435 = vmatprep.subr.mxu0 0.0
      %436 = vmatpush1.xpose.msra.mxu0 0.0
      %437 = vmatprep.subr.mxu0 0.0
      %438 = vmatpush1.xpose.msra.mxu0 0.0
      %439 = vmatprep.subr.mxu0 0.0
      %440 = vmatpush1.xpose.msra.mxu0 0.0
      %441 = vmatprep.subr.mxu0 0.0
      %442 = vmatpush1.xpose.msra.mxu0 0.0
      %443 = vmatprep.mubr.f32.mxu0 0.0
      %444 = vmatmul.mubr.f32.gmra.mrb[0].mxu0 %v329
      %v445 = vpop.f32.mrb[0].mxu0
      %v446 = vadd.f32 0.0, %v445
      %v447 = vpop.f32.mrb[0].mxu0
      %448 = vdwg.mxu0
      %v449 = vld [vmem:[%s290] sm:$0xff]
      %v450 = vld [vmem:[%s293] sm:$0x1]
      %451 = vset.pattern.permute.xlu0 0
      %452 = vperm.xlu0 %451, %v449
      %v453 = vpop.permute.xlu0 %452
      %v454 = vlaneseq
      %v455 = vshrl.u32 %v454, 7
      %v456 = vsub.s32 0, %v455
      %v457 = vrot.slane %v450, %v456
      %vm458 = vcmp.eq.s32.totalorder %v453, %v457
      %s459 = smul.u32 %s21, 128
      %s460 = sadd.s32 %s20, 1
      %s461 = smul.u32 %s460, 8
      %p462 = scmp.lt.s32.totalorder %s459, %s461
      %s463 = smul.u32 %s20, 8
      %s464 = sadd.s32 %s21, 1
      %s465 = smul.u32 %s464, 128
      %p466 = scmp.lt.s32.totalorder %s463, %s465
      %p467 = pnand %p462, %p466
      %p468 = pneg %p467
      %p469 = scmp.gt.s32.totalorder %s465, 16
      %p470 = por %p468, %p469
      // Predicated region
      $region45: #{tpu_custom_call.1} parent=39 // pred_check
        %p471 = pneg %p470
      $region46: #{tpu_custom_call.1} parent=39 // pred_check_branch
        %473 = sbr.rel (%p471) target = $region48
      $region47: #{tpu_custom_call.1} parent=39 // pred_region
        %v474 = vlaneseq
        %v475 = vshrl.u32 %v474, 7
        %v476 = vstv %s463
        %v477 = vadd.s32 %v476, %v475
        %v478 = vlaneseq
        %v479 = vand.u32 %v478, 127
        %v480 = vstv %s459
        %v481 = vadd.s32 %v480, %v479
        %vm482 = vcmp.ne.s32.totalorder %v477, %v481
        %v483 = vld [vmem:[%s293] sm:$0x1]
        %vm484 = vcmp.ge.s32.totalorder %v483, 0
        %v485 = vsel %vm484, 1, 0
        %v486 = vlaneseq
        %v487 = vshrl.u32 %v486, 7
        %v488 = vsub.s32 0, %v487
        %v489 = vrot.slane %v485, %v488
        %vm490 = vcmp.eq.s32.totalorder %v489, 1
        %vm491 = vmand %vm482, %vm490
        %vm492 = vmand %vm458, %vm482
        %v493 = vsel %vm492, 1, 0
        %v494 = vcvt.s32.f32 %v493
        %495 = vmax.xlane.f32.xlu0 %v446
        %v496 = vpop.xlane.xlu0 %495
        %v497 = vld [vmem:[#allocation2] sm:$0xff]
        %v498 = vmax.f32 %v497, %v496
        %v499 = vsel %vm491, %v446, -inf
        %501 = vset.pattern.permute.xlu0 0
        %502 = vperm.xlu0 %501, %v498
        %v503 = vpop.permute.xlu0 %502
        %v505 = vsub.f32 %v499, %v503
        %v506 = vmul.f32 %v505, 1.442695
        %v507 = vpow.pop %v506
        %v508 = vsub.f32 %v497, %v498
        %v509 = vmul.f32 %v508, 1.442695
        %v510 = vpow.pop %v509
        %v511 = vld [vmem:[#allocation3] sm:$0xff]
        %v512 = vmul.f32 %v510, %v511
        %513 = vadd.xlane.f32.xlu0 %v507
        %v514 = vpop.xlane.xlu0 %513
        %v515 = vadd.f32 %v512, %v514
        %vm516 = vcmask 7168
        %517 = vst.msk [vmem:[#allocation3] sm:$0xff] %vm516, %v515
        %518 = vst.msk [vmem:[#allocation2] sm:$0xff] %vm516, %v498
        %v519 = vld [vmem:[#allocation4] sm:$0xff]
        %v520 = vmul.f32 %v494, %v446
        %521 = vadd.xlane.f32.xlu0 %v520
        %v522 = vpop.xlane.xlu0 %521
        %v523 = vadd.f32 %v519, %v522
        %524 = vst.msk [vmem:[#allocation4] sm:$0xff] %vm516, %v523
      $region48: #{tpu_custom_call.1} parent=39 // pred_fallthru
        _
      %p525 = pneg %p470
      // Predicated region
      $region49: #{tpu_custom_call.1} parent=39 // pred_check
        _
      $region50: #{tpu_custom_call.1} parent=39 // pred_check_branch
        %527 = sbr.rel (%p470) target = $region52
      $region51: #{tpu_custom_call.1} parent=39 // pred_region
        %v528 = vsel %vm458, 1, 0
        %v529 = vcvt.s32.f32 %v528
        %530 = vmax.xlane.f32.xlu0 %v446
        %v531 = vpop.xlane.xlu0 %530
        %v532 = vld [vmem:[#allocation2] sm:$0xff]
        %v533 = vmax.f32 %v532, %v531
        %535 = vset.pattern.permute.xlu0 0
        %536 = vperm.xlu0 %535, %v533
        %v537 = vpop.permute.xlu0 %536
        %v539 = vsub.f32 %v446, %v537
        %v540 = vmul.f32 %v539, 1.442695
        %v541 = vpow.pop %v540
        %v542 = vsub.f32 %v532, %v533
        %v543 = vmul.f32 %v542, 1.442695
        %v544 = vpow.pop %v543
        %v545 = vld [vmem:[#allocation3] sm:$0xff]
        %v546 = vmul.f32 %v544, %v545
        %547 = vadd.xlane.f32.xlu0 %v541
        %v548 = vpop.xlane.xlu0 %547
        %v549 = vadd.f32 %v546, %v548
        %vm550 = vcmask 7168
        %551 = vst.msk [vmem:[#allocation3] sm:$0xff] %vm550, %v549
        %552 = vst.msk [vmem:[#allocation2] sm:$0xff] %vm550, %v533
        %v553 = vld [vmem:[#allocation4] sm:$0xff]
        %v554 = vmul.f32 %v529, %v446
        %555 = vadd.xlane.f32.xlu0 %v554
        %v556 = vpop.xlane.xlu0 %555
        %v557 = vadd.f32 %v553, %v556
        %558 = vst.msk [vmem:[#allocation4] sm:$0xff] %vm550, %v557
      $region52: #{tpu_custom_call.1} parent=39 // pred_fallthru
        _
      // Predicated region
      $region53: #{tpu_custom_call.1} parent=39 // pred_check
        %p559 = pneg %p302
      $region54: #{tpu_custom_call.1} parent=39 // pred_check_branch
        %561 = sbr.rel (%p559) target = $region56
      $region55: #{tpu_custom_call.1} parent=39 // pred_region
        %v562 = vld [vmem:[%s297] sm:$0xff]
        %v563 = vld [vmem:[#allocation2] sm:$0xff]
        %v564 = vld [vmem:[#allocation3] sm:$0xff]
        %v565 = vlog2.pop %v564
        %v566 = vmul.f32 %v565, 0.6931472
        %v567 = vadd.f32 %v563, %v566
        %v568 = vld [vmem:[#allocation4] sm:$0xff]
        %v569 = vmul.f32 %v562, %v567
        %v570 = vsub.f32 %v568, %v569
        %v571 = vadd.f32 %v562, 1e-08
        %v572 = vrcp.pop %v571
        %v573 = vmul.f32 %v570, %v572
        %v574 = vmul.f32 %v573, -1.0
        %vm575 = vcmask 7168
        %576 = vst.msk [vmem:[%s301] sm:$0xff] %vm575, %v574
      $region56: #{tpu_custom_call.1} parent=39 // pred_fallthru
        _
      %p577 = scmp.lt.s32.totalorder %s20, 1
      %s578 = scalar_select %p577, %s20, 1
      %s579 = smul.addr %s578, 8
      %s580 = scalar_lea.vmem %s5, %s579
      // Predicated region
      $region57: #{tpu_custom_call.1} parent=39 // pred_check
        %p581 = pneg %p176
      $region58: #{tpu_custom_call.1} parent=39 // pred_check_branch
        %583 = sbr.rel (%p581) target = $region60
      $region59: #{tpu_custom_call.1} parent=39 // pred_region
        _
      $region60: #{tpu_custom_call.1} parent=39 // pred_fallthru
        _
    $region40: #{tpu_custom_call.1} parent=5 // pred_fallthru
      _
    %p584 = scmp.le.s32.totalorder 2, %s11
    // Predicated region
    $region61: #{tpu_custom_call.1} parent=5 // pred_check
      %p585 = pneg %p584
    $region62: #{tpu_custom_call.1} parent=5 // pred_check_branch
      %587 = sbr.rel (%p585) target = $region64
    $region63: #{tpu_custom_call.1} parent=5 // pred_region
      %s588 = ssub.s32 %s11, 2
      // Predicated region
      $region65: #{tpu_custom_call.1} parent=63 // pred_check
        %p589 = pneg %p182
      $region66: #{tpu_custom_call.1} parent=63 // pred_check_branch
        %591 = sbr.rel (%p589) target = $region68
      $region67: #{tpu_custom_call.1} parent=63 // pred_region
        %p592 = scmp.lt.s32.totalorder %s22, 1
        %s593 = scalar_select %p592, %s22, 1
        %s594 = smul.addr %s593, 8
        %s595 = scalar_lea.vmem %s5, %s594
      $region68: #{tpu_custom_call.1} parent=63 // pred_fallthru
        _
    $region64: #{tpu_custom_call.1} parent=5 // pred_fallthru
      _
  $region6: #{tpu_custom_call.1} parent=0 // loop_footer
    %s15 = sadd.s32 1, %s11
  $region7: #{tpu_custom_call.1} parent=0 // loop_footer_branch
    %10 = sbr.rel target = $region3
  $region8: #{tpu_custom_call.1} parent=0 // loop_exit
    _

</llo_original>
